<compile_context>
chip_gen: v6e
topology: v6e:2x2x1
jax: 0.10.0
libtpu: 0.0.40
codegen_flags: <defaults>
</compile_context>

<pallas_src>
import functools

import jax
import jax.numpy as jnp
from jax import lax
from jax.experimental import pallas as pl
from jax.experimental.pallas import tpu as pltpu

_CONST = 1e-4  # matches register_buffer('const', torch.FloatTensor([0.0001]))
_NT_DIMS = (((1,), (1,)), ((), ()))  # contract last dims of both operands


def _attn_pool_kernel(f_ref, wt_ref, o_ref, *, const, block_b):
    """block_b batch items per grid step.

    f_ref : [block_b, C, N]   features (N = H*W on the lane axis)
    wt_ref: [block_b, K, C]   attention weights, transposed
    o_ref : [block_b, K, C]   pooled per-class features, lane-dense on C
    """
    # Static unrolled loop over the batch block (block_b is a Python int).
    for i in range(block_b):
        f_i = f_ref[i]                 # [C, N]
        wt_i = wt_ref[i]               # [K, C]

        # Per-pixel per-class scores: T[k, n] = sum_c w[c, k] * f[c, n]  (MXU, NN)
        t = jnp.dot(wt_i, f_i, preferred_element_type=jnp.float32)       # [K, N]

        # Numerically-stable softplus + const (VPU max/abs/add, EUP exp/log1p).
        a = jnp.maximum(t, 0.0) + jnp.log1p(jnp.exp(-jnp.abs(t))) + const

        # Spatial-sum denominator (lane reduction on the XLU).
        denom = jnp.sum(a, axis=1, keepdims=True)                        # [K, 1]

        # Unnormalized pooled features: R[k, c] = sum_n a[k, n] * f[c, n] (MXU, NT).
        # Cast scores back to the input dtype so bf16 inputs use the bf16 MXU path.
        raw = lax.dot_general(a.astype(f_i.dtype), f_i, _NT_DIMS,
                              preferred_element_type=jnp.float32)        # [K, C]

        # Deferred normalization: scale K*C outputs instead of dividing K*N scores.
        o_ref[i] = (raw * (1.0 / denom)).astype(o_ref.dtype)


def _pick_block_b(batch, requested):
    """Largest divisor of `batch` <= requested, keeping >= 2 grid steps if possible."""
    bb = max(1, min(requested, batch))
    if batch >= 2:
        bb = min(bb, max(1, batch // 2))   # keep the v7x 2-TC parallel axis alive
    while batch % bb:
        bb -= 1
    return bb


def attentional_pooling(features, weights, *, const=_CONST, block_b=8):
    """JAX wrapper for the AttentionalPoolingLayer forward pass.

    features: [B, C, H, W] float
    weights : [B, C, K]    float
    returns : [B, C, K]    float32
    """
    B, C, H, W = features.shape
    Bw, Cw, K = weights.shape
    assert (B, C) == (Bw, Cw), (features.shape, weights.shape)
    N = H * W

    bb = _pick_block_b(B, block_b)
    grid = (B // bb,)

    f = features.reshape(B, C, N)        # spatial axis flattened onto lanes
    wt = jnp.swapaxes(weights, 1, 2)     # [B, K, C]; tiny transpose done in XLA

    elem = jnp.dtype(features.dtype).itemsize
    flops = 4 * B * C * N * K            # two matmuls (2*K*C*N + 2*C*N*K)
    transcendentals = 2 * B * K * N      # exp + log1p per score
    bytes_accessed = elem * (B * C * N + B * K * C) + 4 * B * K * C

    # Double-buffered input/output tiles + f32 intermediates, with headroom;
    # keep under the v7x 64 MiB physical VMEM.
    tile_bytes = 2 * (bb * (C * N + K * C) * elem + bb * K * C * 4)
    interm_bytes = 2 * bb * K * N * 4
    vmem_limit = int(min(max(tile_bytes + interm_bytes + (4 << 20), 32 << 20),
                         64 << 20))

    out_kc = pl.pallas_call(
        functools.partial(_attn_pool_kernel, const=const, block_b=bb),
        out_shape=jax.ShapeDtypeStruct((B, K, C), jnp.float32),
        grid=grid,
        in_specs=[
            pl.BlockSpec((bb, C, N), lambda b: (b, 0, 0)),
            pl.BlockSpec((bb, K, C), lambda b: (b, 0, 0)),
        ],
        out_specs=pl.BlockSpec((bb, K, C), lambda b: (b, 0, 0)),
        compiler_params=pltpu.CompilerParams(
            dimension_semantics=("parallel",),
            vmem_limit_bytes=vmem_limit),
        cost_estimate=pl.CostEstimate(
            flops=flops,
            transcendentals=transcendentals,
            bytes_accessed=bytes_accessed),
    )(f, wt)

    # Module contract is [B, C, K]; cheap layout transpose handled by XLA.
    return jnp.swapaxes(out_kc, 1, 2)


def _reference(features, weights, const=_CONST):
    """Pure-JAX mirror of the PyTorch forward pass."""
    f = features[..., None]                                        # [B, C, H, W, 1]
    w = weights[:, :, None, None, :]                               # [B, C, 1, 1, K]
    att_num = jax.nn.softplus(jnp.sum(f * w, axis=1)) + const      # [B, H, W, K]
    att_denom = jnp.sum(jnp.sum(att_num, axis=2), axis=1)          # [B, K]
    att_map = att_num / att_denom[:, None, None, :]                # [B, H, W, K]
    return jnp.sum(jnp.sum(att_map[:, None] * f, axis=3), axis=2)  # [B, C, K]


if __name__ == "__main__":
    # Small shapes consistent with the module: B=2 images, C=32 feature
    # channels, 16x16 spatial map, K=8 classes.
    B, C, H, W, K = 2, 32, 16, 16, 8

    key = jax.random.PRNGKey(0)
    kf, kw = jax.random.split(key)
    features = jax.random.normal(kf, (B, C, H, W), dtype=jnp.float32)
    weights = jax.random.normal(kw, (B, C, K), dtype=jnp.float32)

    out = attentional_pooling(features, weights)
    out = jax.block_until_ready(out)

    ref = _reference(features, weights)
    assert out.shape == (B, C, K), out.shape
    max_err = float(jnp.max(jnp.abs(out - ref)))
    assert jnp.allclose(out, ref, atol=1e-4, rtol=1e-4), max_err

    print("KERNEL_OK")
</pallas_src>

<mosaic_0001>
module attributes {stable_mosaic.version = 11 : i64} {
  func.func @_attn_pool_kernel(%arg0: i32, %arg1: memref<1x32x256xf32, #tpu.memory_space<vmem>>, %arg2: memref<1x8x32xf32, #tpu.memory_space<vmem>>, %arg3: memref<1x8x32xf32, #tpu.memory_space<vmem>>) attributes {dimension_semantics = [#tpu.dimension_semantics<parallel>], iteration_bounds = array<i64: 2>, scalar_prefetch = 0 : i64, scratch_operands = 0 : i64, tpu.core_type = #tpu.core_type<tc>, window_params = [{transform_indices = @transform_0, window_bounds = array<i64: 1, 32, 256>}, {transform_indices = @transform_1, window_bounds = array<i64: 1, 8, 32>}, {transform_indices = @transform_2, window_bounds = array<i64: 1, 8, 32>}]} {
    %c0 = arith.constant 0 : index
    %c0_0 = arith.constant 0 : index
    %c0_1 = arith.constant 0 : index
    %0 = vector.load %arg1[%c0, %c0_0, %c0_1] : memref<1x32x256xf32, #tpu.memory_space<vmem>>, vector<1x32x256xf32>
    %1 = vector.shape_cast %0 : vector<1x32x256xf32> to vector<32x256xf32>
    %c0_2 = arith.constant 0 : index
    %c0_3 = arith.constant 0 : index
    %c0_4 = arith.constant 0 : index
    %2 = vector.load %arg2[%c0_2, %c0_3, %c0_4] : memref<1x8x32xf32, #tpu.memory_space<vmem>>, vector<1x8x32xf32>
    %3 = vector.shape_cast %2 : vector<1x8x32xf32> to vector<8x32xf32>
    %cst = arith.constant dense<0.000000e+00> : vector<8x256xf32>
    %4 = tpu.matmul %3, %1, %cst {dimension_numbers = #tpu.dot_dimension_numbers<[1], [0], [0], [1], [0, 0, 1, 1], [], []>} : vector<8x32xf32>, vector<32x256xf32>, vector<8x256xf32> -> vector<8x256xf32>
    %cst_5 = arith.constant 0.000000e+00 : f32
    %5 = vector.broadcast %cst_5 : f32 to vector<8x256xf32>
    %6 = arith.maximumf %4, %5 : vector<8x256xf32>
    %7 = math.absf %4 : vector<8x256xf32>
    %cst_6 = arith.constant 0.000000e+00 : f32
    %8 = vector.broadcast %cst_6 : f32 to vector<8x256xf32>
    %9 = arith.subf %8, %7 : vector<8x256xf32>
    %10 = math.exp %9 : vector<8x256xf32>
    %11 = math.log1p %10 : vector<8x256xf32>
    %12 = arith.addf %6, %11 : vector<8x256xf32>
    %cst_7 = arith.constant 9.99999974E-5 : f32
    %13 = vector.broadcast %cst_7 : f32 to vector<8x256xf32>
    %14 = arith.addf %12, %13 : vector<8x256xf32>
    %cst_8 = arith.constant dense<0.000000e+00> : vector<8xf32>
    %15 = vector.multi_reduction <add>, %14, %cst_8 [1] : vector<8x256xf32> to vector<8xf32>
    %16 = vector.shape_cast %15 : vector<8xf32> to vector<8x1xf32>
    %cst_9 = arith.constant dense<0.000000e+00> : vector<8x32xf32>
    %17 = tpu.matmul %14, %1, %cst_9 {dimension_numbers = #tpu.dot_dimension_numbers<[1], [1], [0], [0], [0, 0, 1, 0], [], []>} : vector<8x256xf32>, vector<32x256xf32>, vector<8x32xf32> -> vector<8x32xf32>
    %cst_10 = arith.constant 1.000000e+00 : f32
    %18 = vector.broadcast %cst_10 : f32 to vector<8x1xf32>
    %19 = arith.divf %18, %16 : vector<8x1xf32>
    %20 = vector.broadcast %19 : vector<8x1xf32> to vector<8x32xf32>
    %21 = arith.mulf %17, %20 : vector<8x32xf32>
    %c0_11 = arith.constant 0 : index
    %c0_12 = arith.constant 0 : index
    %c0_13 = arith.constant 0 : index
    %22 = vector.load %arg3[%c0_11, %c0_12, %c0_13] : memref<1x8x32xf32, #tpu.memory_space<vmem>>, vector<1x8x32xf32>
    %23 = vector.shape_cast %22 : vector<1x8x32xf32> to vector<8x32xf32>
    %24 = vector.shape_cast %21 : vector<8x32xf32> to vector<1x8x32xf32>
    tpu.vector_store %arg3[%c0_11, %c0_12, %c0_13], %24 {strides = array<i32>} : memref<1x8x32xf32, #tpu.memory_space<vmem>>, vector<1x8x32xf32>,
    return
  }
  func.func @transform_0(%arg0: i32) -> (i32, i32, i32) {
    %c0_i32 = arith.constant 0 : i32
    %c0_i32_0 = arith.constant 0 : i32
    %c0_i32_1 = arith.constant 0 : i32
    return %arg0, %c0_i32, %c0_i32_0 : i32, i32, i32
  }
  func.func @transform_1(%arg0: i32) -> (i32, i32, i32) {
    %c0_i32 = arith.constant 0 : i32
    %c0_i32_0 = arith.constant 0 : i32
    %c0_i32_1 = arith.constant 0 : i32
    return %arg0, %c0_i32, %c0_i32_0 : i32, i32, i32
  }
  func.func @transform_2(%arg0: i32) -> (i32, i32, i32) {
    %c0_i32 = arith.constant 0 : i32
    %c0_i32_0 = arith.constant 0 : i32
    %c0_i32_1 = arith.constant 0 : i32
    return %arg0, %c0_i32, %c0_i32_0 : i32, i32, i32
  }
}

</mosaic_0001>

<llo_original>
// kernel: tpu_custom_call.1
$region0: #{tpu_custom_call.1}
  #allocation0 [shape = 'u32[]', space=smem, size = 0x4, offset = 0x4, fixed_abs, tag = 'smem constant byte address 0x4 - core index']
  #allocation1 [shape = 'u32[144,128]{1,0:T(1,128)}', space=vmem, size = 0x12000, scoped, tag = 'internal scratch']
  %s0 = inlined_call_operand.hbm [shape: f32[2,32,256], index: 0, kind: input, shape index: {}]
  %s1 = inlined_call_operand.hbm [shape: f32[2,8,32], index: 1, kind: input, shape index: {}]
  %s2 = inlined_call_operand.hbm [shape: f32[2,8,32], index: 2, kind: output, shape index: {}]
  %s3 = sld [smem:[#allocation0]]
  $region49: #{tpu_custom_call.1} parent=0
    _
  %s5 = ssub.s32 1, %s3
  %s6 = scalar_select 0, %s5, %s3
  $region1: #{tpu_custom_call.1} parent=0
    #allocation2 [shape = 'u8[65536]{0}', space=vmem, size = 0x10000, scoped, tag = 'input window, operand 0']
    #allocation3 [shape = 's32[2]{0}', space=sflag, size = 0x8, scoped, tag = 'scoped memory for tpu_custom_call.1']
    #allocation4 [shape = 's32[2]{0}', space=sflag, size = 0x8, scoped, tag = 'scoped memory for tpu_custom_call.1']
    #allocation5 [shape = 'u8[8192]{0}', space=vmem, size = 0x2000, scoped, tag = 'input window, operand 1']
    #allocation6 [shape = 's32[2]{0}', space=sflag, size = 0x8, scoped, tag = 'scoped memory for tpu_custom_call.1']
    #allocation7 [shape = 'u8[8192]{0}', space=vmem, size = 0x2000, scoped, tag = 'output window, operand 0']
    %7 = vsyncpa [#allocation3], 0
    %s8 = scalar_lea.sflag [#allocation3], 1
    %9 = vsyncpa %s8, 0
    %10 = vsyncpa [#allocation6], 0
    %s11 = scalar_lea.sflag [#allocation6], 1
    %12 = vsyncpa %s11, 0
    %13 = vsyncpa [#allocation4], 0
    %s14 = scalar_lea.sflag [#allocation4], 1
    %15 = vsyncpa %s14, 0
    loop: start=0, step=1, limit=4
    $region2: #{tpu_custom_call.1} parent=1 // loop_pre_header
      _
    $region3: #{tpu_custom_call.1} parent=1 // loop_header
      %s17 = sphi 0, %s21
      %p18 = scmp.ge.s32.totalorder %s17, 4
      %s27 = sphi 0, %s29
      %s30 = sphi 0, %s27
      %s31 = sphi 0, %s30
      %s47 = sphi 0, %s31
      %s53 = sphi 0, %s55
      %s56 = sphi 0, %s53
      %s57 = sphi 0, %s56
      %s73 = sphi 0, %s57
      %s79 = sphi 0, %s81
      %s82 = sphi 0, %s79
      %s83 = sphi 0, %s82
      %s99 = sphi 0, %s83
    $region4: #{tpu_custom_call.1} parent=1 // loop_header_branch
      %20 = sbr.rel (%p18) target = $region8
    $region5: #{tpu_custom_call.1} parent=1 // loop_body
      %s22 = ssub.s32 %s17, 1
      %s23 = ssub.s32 %s17, 2
      %s24 = sadd.s32 %s17, 1
      %s25 = ssub.s32 %s17, %s24
      %p26 = scmp.eq.s32.totalorder %s25, 0
      %s28 = sadd.s32 %s27, 1
      %s29 = scalar_select %p26, %s27, %s28
      %p32 = pneg %p26
      %p33 = scmp.eq.s32.totalorder %s17, 1
      %p34 = por %p32, %p33
      %p35 = scmp.ne.s32.totalorder %s27, %s30
      %p36 = scmp.eq.s32.totalorder %s17, 0
      %p37 = por %p35, %p36
      %p38 = scmp.ne.s32.totalorder %s27, %s30
      %p39 = scmp.eq.s32.totalorder %s22, 1
      %p40 = por %p38, %p39
      %p41 = scmp.ne.s32.totalorder %s30, %s31
      %p42 = scmp.eq.s32.totalorder %s22, 0
      %p43 = por %p41, %p42
      %p44 = scmp.ne.s32.totalorder %s30, %s31
      %p45 = scmp.eq.s32.totalorder %s23, 1
      %p46 = por %p44, %p45
      %p48 = scmp.ne.s32.totalorder %s31, %s47
      %p49 = scmp.eq.s32.totalorder %s23, 0
      %p50 = por %p48, %p49
      %s51 = ssub.s32 %s17, %s24
      %p52 = scmp.eq.s32.totalorder %s51, 0
      %s54 = sadd.s32 %s53, 1
      %s55 = scalar_select %p52, %s53, %s54
      %p58 = pneg %p52
      %p59 = scmp.eq.s32.totalorder %s17, 1
      %p60 = por %p58, %p59
      %p61 = scmp.ne.s32.totalorder %s53, %s56
      %p62 = scmp.eq.s32.totalorder %s17, 0
      %p63 = por %p61, %p62
      %p64 = scmp.ne.s32.totalorder %s53, %s56
      %p65 = scmp.eq.s32.totalorder %s22, 1
      %p66 = por %p64, %p65
      %p67 = scmp.ne.s32.totalorder %s56, %s57
      %p68 = scmp.eq.s32.totalorder %s22, 0
      %p69 = por %p67, %p68
      %p70 = scmp.ne.s32.totalorder %s56, %s57
      %p71 = scmp.eq.s32.totalorder %s23, 1
      %p72 = por %p70, %p71
      %p74 = scmp.ne.s32.totalorder %s57, %s73
      %p75 = scmp.eq.s32.totalorder %s23, 0
      %p76 = por %p74, %p75
      %s77 = ssub.s32 %s17, %s24
      %p78 = scmp.eq.s32.totalorder %s77, 0
      %s80 = sadd.s32 %s79, 1
      %s81 = scalar_select %p78, %s79, %s80
      %p84 = pneg %p78
      %p85 = scmp.eq.s32.totalorder %s17, 1
      %p86 = por %p84, %p85
      %p87 = scmp.ne.s32.totalorder %s79, %s82
      %p88 = scmp.eq.s32.totalorder %s17, 0
      %p89 = por %p87, %p88
      %p90 = scmp.ne.s32.totalorder %s79, %s82
      %p91 = scmp.eq.s32.totalorder %s22, 1
      %p92 = por %p90, %p91
      %p93 = scmp.ne.s32.totalorder %s82, %s83
      %p94 = scmp.eq.s32.totalorder %s22, 0
      %p95 = por %p93, %p94
      %p96 = scmp.ne.s32.totalorder %s82, %s83
      %p97 = scmp.eq.s32.totalorder %s23, 1
      %p98 = por %p96, %p97
      %p100 = scmp.ne.s32.totalorder %s83, %s99
      %p101 = scmp.eq.s32.totalorder %s23, 0
      %p102 = por %p100, %p101
      %p103 = scmp.le.s32.totalorder 1, %s17
      %p104 = scmp.lt.s32.totalorder %s17, 3
      %p105 = pnand %p103, %p104
      %p106 = pneg %p105
      // Predicated region
      $region9: #{tpu_custom_call.1} parent=5 // pred_check
        _
      $region10: #{tpu_custom_call.1} parent=5 // pred_check_branch
        %108 = sbr.rel (%p105) target = $region12
      $region11: #{tpu_custom_call.1} parent=5 // pred_region
        %s109 = ssub.s32 %s17, 1
      $region12: #{tpu_custom_call.1} parent=5 // pred_fallthru
        _
      %p110 = scmp.lt.s32.totalorder %s17, 2
      // Predicated region
      $region13: #{tpu_custom_call.1} parent=5 // pred_check
        %p111 = pneg %p110
      $region14: #{tpu_custom_call.1} parent=5 // pred_check_branch
        %113 = sbr.rel (%p111) target = $region16
      $region15: #{tpu_custom_call.1} parent=5 // pred_region
        // Predicated region
        $region17: #{tpu_custom_call.1} parent=15 // pred_check
          %p114 = pneg %p37
        $region18: #{tpu_custom_call.1} parent=15 // pred_check_branch
          %116 = sbr.rel (%p114) target = $region20
        $region19: #{tpu_custom_call.1} parent=15 // pred_region
          %s117 = sand.u32 %s27, 1
          %s118 = scalar_lea.sflag [#allocation3], %s117
          %s119 = sand.u32 %s27, 1
          %s120 = smul.addr %s119, 64
          %s121 = scalar_lea.vmem [#allocation2], %s120
          %s123 = ssub.s32 1024, 1024
          %124 = vsyncadd %s118, %s123
          %s125 = smul.addr %s17, 8
          %s126 = smul.addr %s125, 128
          %s127 = scalar_lea.hbm %s0, %s126
          %s128 = sshll.u32 %s121, 4
          %s129 = int_to_ptr.vmem [resolvable:$true] %s128
          %134 = dma.hbm_to_vmem [thread:$0]  %s127, 1024, %s129, %s118, 256, 256, 16
        $region20: #{tpu_custom_call.1} parent=15 // pred_fallthru
          _
        // Predicated region
        $region21: #{tpu_custom_call.1} parent=15 // pred_check
          %p135 = pneg %p63
        $region22: #{tpu_custom_call.1} parent=15 // pred_check_branch
          %137 = sbr.rel (%p135) target = $region24
        $region23: #{tpu_custom_call.1} parent=15 // pred_region
          %s138 = sand.u32 %s53, 1
          %s139 = scalar_lea.sflag [#allocation6], %s138
          %s140 = sand.u32 %s53, 1
          %s141 = smul.addr %s140, 8
          %s142 = scalar_lea.vmem [#allocation5], %s141
          %s144 = ssub.s32 128, 128
          %145 = vsyncadd %s139, %s144
          %s146 = smul.addr %s17, 128
          %s147 = scalar_lea.hbm %s1, %s146
          %s149 = sshll.u32 %s142, 4
          %s150 = int_to_ptr.vmem [resolvable:$true] %s149
          %152 = dma.hbm_to_vmem [thread:$0]  %s147, 128, %s150, %s139
        $region24: #{tpu_custom_call.1} parent=15 // pred_fallthru
          _
      $region16: #{tpu_custom_call.1} parent=5 // pred_fallthru
        _
      %p153 = scmp.le.s32.totalorder 1, %s17
      %p154 = scmp.lt.s32.totalorder %s17, 3
      %p155 = pnand %p153, %p154
      %p156 = pneg %p155
      // Predicated region
      $region25: #{tpu_custom_call.1} parent=5 // pred_check
        _
      $region26: #{tpu_custom_call.1} parent=5 // pred_check_branch
        %158 = sbr.rel (%p155) target = $region28
      $region27: #{tpu_custom_call.1} parent=5 // pred_region
        %s159 = ssub.s32 %s17, 1
        %s160 = sand.u32 %s30, 1
        %s161 = scalar_lea.sflag [#allocation3], %s160
        %s162 = sand.u32 %s30, 1
        %s163 = smul.addr %s162, 64
        %s164 = scalar_lea.vmem [#allocation2], %s163
        // Predicated region
        $region29: #{tpu_custom_call.1} parent=27 // pred_check
          %p165 = pneg %p43
        $region30: #{tpu_custom_call.1} parent=27 // pred_check_branch
          %167 = sbr.rel (%p165) target = $region32
        $region31: #{tpu_custom_call.1} parent=27 // pred_region
          %168 = dma.done %s161, 1024
        $region32: #{tpu_custom_call.1} parent=27 // pred_fallthru
          _
        %s169 = sand.u32 %s56, 1
        %s170 = scalar_lea.sflag [#allocation6], %s169
        %s171 = sand.u32 %s56, 1
        %s172 = smul.addr %s171, 8
        %s173 = scalar_lea.vmem [#allocation5], %s172
        // Predicated region
        $region33: #{tpu_custom_call.1} parent=27 // pred_check
          %p174 = pneg %p69
        $region34: #{tpu_custom_call.1} parent=27 // pred_check_branch
          %176 = sbr.rel (%p174) target = $region36
        $region35: #{tpu_custom_call.1} parent=27 // pred_region
          %177 = dma.done %s170, 128
        $region36: #{tpu_custom_call.1} parent=27 // pred_fallthru
          _
        %s178 = sand.u32 %s30, 1
        %s179 = scalar_lea.sflag [#allocation3], %s178
        %s180 = sand.u32 %s30, 1
        %s181 = smul.addr %s180, 64
        %s182 = scalar_lea.vmem [#allocation2], %s181
        %p183 = pneg %p43
        %p184 = pneg %p40
        %s185 = sand.u32 %s56, 1
        %s186 = scalar_lea.sflag [#allocation6], %s185
        %s187 = sand.u32 %s56, 1
        %s188 = smul.addr %s187, 8
        %s189 = scalar_lea.vmem [#allocation5], %s188
        %p190 = pneg %p69
        %p191 = pneg %p66
        %p192 = pneg %p95
        %p193 = pneg %p92
        %s194 = sand.u32 %s82, 1
        %s195 = scalar_lea.sflag [#allocation4], %s194
        %s196 = sand.u32 %s82, 1
        %s197 = smul.addr %s196, 8
        %s198 = scalar_lea.vmem [#allocation7], %s197
        %v199 = vld [vmem:[%s164] sm:$0xff]
        %v200 = vld [vmem:[%s164 + $0x8] sm:$0xff]
        %v201 = vld [vmem:[%s164 + $0x10] sm:$0xff]
        %v202 = vld [vmem:[%s164 + $0x18] sm:$0xff]
        %v203 = vld [vmem:[%s164 + $0x20] sm:$0xff]
        %v204 = vld [vmem:[%s164 + $0x28] sm:$0xff]
        %v205 = vld [vmem:[%s164 + $0x30] sm:$0xff]
        %v206 = vld [vmem:[%s164 + $0x38] sm:$0xff]
        %v207 = vld [vmem:[%s173] sm:$0xff]
        %vm208 = vcmask 261120
        %v210 = vsel %vm208, %v207, 0
        %212 = vmatprep.subr.mxu0 0.0
        %213 = vmatpush1.msra.mxu0 0.0
        %214 = vmatprep.subr.mxu0 0.0
        %215 = vmatpush1.msra.mxu0 0.0
        %216 = vmatprep.subr.mxu0 0.0
        %217 = vmatpush1.msra.mxu0 0.0
        %218 = vmatprep.subr.mxu0 0.0
        %219 = vmatpush1.msra.mxu0 0.0
        %220 = vmatprep.subr.mxu0 0.0
        %221 = vmatpush1.msra.mxu0 0.0
        %222 = vmatprep.subr.mxu0 0.0
        %223 = vmatpush1.msra.mxu0 0.0
        %224 = vmatprep.subr.mxu0 0.0
        %225 = vmatpush1.msra.mxu0 0.0
        %226 = vmatprep.subr.mxu0 0.0
        %227 = vmatpush1.msra.mxu0 0.0
        %228 = vmatprep.subr.mxu0 0.0
        %229 = vmatpush1.msra.mxu0 0.0
        %230 = vmatprep.subr.mxu0 0.0
        %231 = vmatpush1.msra.mxu0 0.0
        %232 = vmatprep.subr.mxu0 0.0
        %233 = vmatpush1.msra.mxu0 0.0
        %234 = vmatprep.subr.mxu0 0.0
        %235 = vmatpush1.msra.mxu0 0.0
        %236 = vmatprep.subr.mxu0 %v206
        %237 = vmatpush1.msra.mxu0 %v205
        %238 = vmatprep.subr.mxu0 %v204
        %239 = vmatpush1.msra.mxu0 %v203
        %240 = vmatprep.subr.mxu0 %v202
        %241 = vmatpush1.msra.mxu0 %v201
        %242 = vmatprep.subr.mxu0 %v200
        %243 = vmatpush1.msra.mxu0 %v199
        %244 = vmatprep.subr.mxu0 0.0
        %245 = vmatpush2.msra.mxu0 0.0
        %246 = vmatprep.subr.mxu0 0.0
        %247 = vmatpush2.msra.mxu0 0.0
        %248 = vmatprep.subr.mxu0 0.0
        %249 = vmatpush2.msra.mxu0 0.0
        %250 = vmatprep.subr.mxu0 0.0
        %251 = vmatpush2.msra.mxu0 0.0
        %252 = vmatprep.subr.mxu0 0.0
        %253 = vmatpush2.msra.mxu0 0.0
        %254 = vmatprep.subr.mxu0 0.0
        %255 = vmatpush2.msra.mxu0 0.0
        %256 = vmatprep.subr.mxu0 0.0
        %257 = vmatpush2.msra.mxu0 0.0
        %258 = vmatprep.subr.mxu0 0.0
        %259 = vmatpush2.msra.mxu0 0.0
        %260 = vmatprep.subr.mxu0 0.0
        %261 = vmatpush2.msra.mxu0 0.0
        %262 = vmatprep.subr.mxu0 0.0
        %263 = vmatpush2.msra.mxu0 0.0
        %264 = vmatprep.subr.mxu0 0.0
        %265 = vmatpush2.msra.mxu0 0.0
        %266 = vmatprep.subr.mxu0 0.0
        %267 = vmatpush2.msra.mxu0 0.0
        %268 = vmatprep.subr.mxu0 0.0
        %269 = vmatpush2.msra.mxu0 0.0
        %270 = vmatprep.subr.mxu0 0.0
        %271 = vmatpush2.msra.mxu0 0.0
        %272 = vmatprep.subr.mxu0 0.0
        %273 = vmatpush2.msra.mxu0 0.0
        %274 = vmatprep.subr.mxu0 0.0
        %275 = vmatpush2.msra.mxu0 0.0
        %276 = vmatprep.mubr.f32.mxu0 0.0
        %277 = vmatmul.mubr.f32.gmra.mxu0 %v210
        %v278 = vpop.f32.mrf.mxu0
        %v279 = vadd.f32 0.0, %v278
        %v280 = vpop.f32.mrf.mxu0
        %v281 = vadd.f32 0.0, %v280
        %282 = vdwg.mxu0
        %v283 = vmax.f32 %v279, 0.0
        %v284 = vmax.f32 %v281, 0.0
        %v285 = vand.u32 2147483647, %v279
        %v286 = vand.u32 2147483647, %v281
        %v287 = vsub.f32 0.0, %v285
        %v288 = vsub.f32 0.0, %v286
        %v289 = vmul.f32 %v287, 1.442695
        %v290 = vpow.pop %v289
        %v291 = vmul.f32 %v288, 1.442695
        %v292 = vpow.pop %v291
        %v293 = vadd.f32 %v290, 1.0
        %v294 = vlog2.pop %v293
        %v295 = vmul.f32 %v294, 0.6931472
        %v296 = vmul.f32 -0.5, %v290
        %v297 = vadd.f32 %v296, 1.0
        %v298 = vmul.f32 %v297, %v290
        %v299 = vand.u32 2147483647, %v290
        %vm300 = vcmp.lt.f32.partialorder %v299, 0.0004427343
        %v301 = vsel %vm300, %v298, %v295
        %v302 = vadd.f32 %v292, 1.0
        %v303 = vlog2.pop %v302
        %v304 = vmul.f32 %v303, 0.6931472
        %v305 = vmul.f32 -0.5, %v292
        %v306 = vadd.f32 %v305, 1.0
        %v307 = vmul.f32 %v306, %v292
        %v308 = vand.u32 2147483647, %v292
        %vm309 = vcmp.lt.f32.partialorder %v308, 0.0004427343
        %v310 = vsel %vm309, %v307, %v304
        %v311 = vadd.f32 %v283, %v301
        %v312 = vadd.f32 %v284, %v310
        %v313 = vadd.f32 %v311, 0.0001
        %v314 = vadd.f32 %v312, 0.0001
        %v315 = vadd.f32 %v313, %v314
        %316 = vadd.xlane.f32.xlu0 %v315
        %v317 = vpop.xlane.xlu0 %316
        %318 = vmatprep.subr.mxu0 0.0
        %319 = vmatpush1.xpose.msra.mxu0 0.0
        %320 = vmatprep.subr.mxu0 0.0
        %321 = vmatpush1.xpose.msra.mxu0 0.0
        %322 = vmatprep.subr.mxu0 0.0
        %323 = vmatpush1.xpose.msra.mxu0 0.0
        %324 = vmatprep.subr.mxu0 0.0
        %325 = vmatpush1.xpose.msra.mxu0 0.0
        %326 = vmatprep.subr.mxu0 0.0
        %327 = vmatpush1.xpose.msra.mxu0 0.0
        %328 = vmatprep.subr.mxu0 0.0
        %329 = vmatpush1.xpose.msra.mxu0 0.0
        %330 = vmatprep.subr.mxu0 0.0
        %331 = vmatpush1.xpose.msra.mxu0 0.0
        %332 = vmatprep.subr.mxu0 0.0
        %333 = vmatpush1.xpose.msra.mxu0 0.0
        %334 = vmatprep.subr.mxu0 0.0
        %335 = vmatpush1.xpose.msra.mxu0 0.0
        %336 = vmatprep.subr.mxu0 0.0
        %337 = vmatpush1.xpose.msra.mxu0 0.0
        %338 = vmatprep.subr.mxu0 0.0
        %339 = vmatpush1.xpose.msra.mxu0 0.0
        %340 = vmatprep.subr.mxu0 0.0
        %341 = vmatpush1.xpose.msra.mxu0 0.0
        %342 = vmatprep.subr.mxu0 %v206
        %343 = vmatpush1.xpose.msra.mxu0 %v205
        %344 = vmatprep.subr.mxu0 %v204
        %345 = vmatpush1.xpose.msra.mxu0 %v203
        %346 = vmatprep.subr.mxu0 %v202
        %347 = vmatpush1.xpose.msra.mxu0 %v201
        %348 = vmatprep.subr.mxu0 %v200
        %349 = vmatpush1.xpose.msra.mxu0 %v199
        %350 = vmatprep.subr.mxu0 0.0
        %351 = vmatpush2.xpose.msra.mxu0 0.0
        %352 = vmatprep.subr.mxu0 0.0
        %353 = vmatpush2.xpose.msra.mxu0 0.0
        %354 = vmatprep.subr.mxu0 0.0
        %355 = vmatpush2.xpose.msra.mxu0 0.0
        %356 = vmatprep.subr.mxu0 0.0
        %357 = vmatpush2.xpose.msra.mxu0 0.0
        %358 = vmatprep.subr.mxu0 0.0
        %359 = vmatpush2.xpose.msra.mxu0 0.0
        %360 = vmatprep.subr.mxu0 0.0
        %361 = vmatpush2.xpose.msra.mxu0 0.0
        %362 = vmatprep.subr.mxu0 0.0
        %363 = vmatpush2.xpose.msra.mxu0 0.0
        %364 = vmatprep.subr.mxu0 0.0
        %365 = vmatpush2.xpose.msra.mxu0 0.0
        %366 = vmatprep.subr.mxu0 0.0
        %367 = vmatpush2.xpose.msra.mxu0 0.0
        %368 = vmatprep.subr.mxu0 0.0
        %369 = vmatpush2.xpose.msra.mxu0 0.0
        %370 = vmatprep.subr.mxu0 0.0
        %371 = vmatpush2.xpose.msra.mxu0 0.0
        %372 = vmatprep.subr.mxu0 0.0
        %373 = vmatpush2.xpose.msra.mxu0 0.0
        %374 = vmatprep.subr.mxu0 0.0
        %375 = vmatpush2.xpose.msra.mxu0 0.0
        %376 = vmatprep.subr.mxu0 0.0
        %377 = vmatpush2.xpose.msra.mxu0 0.0
        %378 = vmatprep.subr.mxu0 0.0
        %379 = vmatpush2.xpose.msra.mxu0 0.0
        %380 = vmatprep.subr.mxu0 0.0
        %381 = vmatpush2.xpose.msra.mxu0 0.0
        %382 = vmatprep.mubr.f32.mxu0 %v314
        %383 = vmatmul.mubr.f32.gmra.mxu0 %v313
        %v384 = vpop.f32.mrf.mxu0
        %v385 = vadd.f32 0.0, %v384
        %v386 = vpop.f32.mrf.mxu0
        %387 = vdwg.mxu0
        %v388 = vrcp.pop %v317
        %v389 = vmul.f32 1.0, %v388
        %v390 = vmul.f32 %v385, %v389
        %391 = vst.msk [vmem:[%s198] sm:$0xff] %vm208, %v390
        %s392 = sand.u32 %s82, 1
        %s393 = scalar_lea.sflag [#allocation4], %s392
        %s394 = sand.u32 %s82, 1
        %s395 = smul.addr %s394, 8
        %s396 = scalar_lea.vmem [#allocation7], %s395
        // Predicated region
        $region37: #{tpu_custom_call.1} parent=27 // pred_check
          %p397 = pneg %p92
        $region38: #{tpu_custom_call.1} parent=27 // pred_check_branch
          %399 = sbr.rel (%p397) target = $region40
        $region39: #{tpu_custom_call.1} parent=27 // pred_region
          %s401 = ssub.s32 128, 128
          %402 = vsyncadd %s393, %s401
          %s403 = smul.addr %s22, 128
          %s404 = scalar_lea.hbm %s2, %s403
          %s406 = sshll.u32 %s396, 4
          %s407 = int_to_ptr.vmem [resolvable:$true] %s406
          %409 = dma.vmem_to_hbm [thread:$0]  %s407, 128, %s404, %s393
        $region40: #{tpu_custom_call.1} parent=27 // pred_fallthru
          _
      $region28: #{tpu_custom_call.1} parent=5 // pred_fallthru
        _
      %p410 = scmp.le.s32.totalorder 2, %s17
      // Predicated region
      $region41: #{tpu_custom_call.1} parent=5 // pred_check
        %p411 = pneg %p410
      $region42: #{tpu_custom_call.1} parent=5 // pred_check_branch
        %413 = sbr.rel (%p411) target = $region44
      $region43: #{tpu_custom_call.1} parent=5 // pred_region
        %s414 = ssub.s32 %s17, 2
        // Predicated region
        $region45: #{tpu_custom_call.1} parent=43 // pred_check
          %p415 = pneg %p98
        $region46: #{tpu_custom_call.1} parent=43 // pred_check_branch
          %417 = sbr.rel (%p415) target = $region48
        $region47: #{tpu_custom_call.1} parent=43 // pred_region
          %s418 = sand.u32 %s83, 1
          %s419 = scalar_lea.sflag [#allocation4], %s418
          %s420 = sand.u32 %s83, 1
          %s421 = smul.addr %s420, 8
          %s422 = scalar_lea.vmem [#allocation7], %s421
          %423 = dma.done %s419, 128
        $region48: #{tpu_custom_call.1} parent=43 // pred_fallthru
          _
      $region44: #{tpu_custom_call.1} parent=5 // pred_fallthru
        _
    $region6: #{tpu_custom_call.1} parent=1 // loop_footer
      %s21 = sadd.s32 1, %s17
    $region7: #{tpu_custom_call.1} parent=1 // loop_footer_branch
      %16 = sbr.rel target = $region3
    $region8: #{tpu_custom_call.1} parent=1 // loop_exit
      _
    %424 = vsyncpa [#allocation3], 1
    %s425 = scalar_lea.sflag [#allocation3], 1
    %426 = vsyncpa %s425, 1
    %427 = vsyncpa [#allocation6], 1
    %s428 = scalar_lea.sflag [#allocation6], 1
    %429 = vsyncpa %s428, 1
    %430 = vsyncpa [#allocation4], 1
    %s431 = scalar_lea.sflag [#allocation4], 1
    %432 = vsyncpa %s431, 1

</llo_original>
